<compile_context>
chip_gen: v7x
topology: tpu7x:2x2x1
jax: 0.10.0
libtpu: 0.0.40
codegen_flags: <defaults>
</compile_context>

<pallas_src>
import functools

import jax
import jax.numpy as jnp
from jax.experimental import pallas as pl
from jax.experimental.pallas import tpu as pltpu

_LANE = 128


def _round_up(n, m):
    return (n + m - 1) // m * m


@functools.lru_cache(maxsize=1)
def _tensorcores_per_chip():
    """Static (Python-level) TC count: v7x exposes 2 TensorCores per chip."""
    try:
        kind = getattr(jax.devices()[0], "device_kind", "").lower()
        if "v7" in kind or "7x" in kind:
            return 2
    except Exception:
        pass
    return 1


def _mlp_kernel(x_ref, w1_ref, b1_ref, w2_ref, b2_ref, o_ref):
    # In-kernel cast of the x tile to bf16 (f32 arrives via DMA; cast is VPU
    # work hidden under the MXU slot).  f32 accumulation kept throughout.
    x_bf = x_ref[...].astype(jnp.bfloat16)
    # fc1: (TB, E) bf16 @ (E, H) bf16 -> f32 accum, + bias (f32), ReLU.
    h = jnp.dot(x_bf, w1_ref[...], preferred_element_type=jnp.float32)
    h = jnp.maximum(h + b1_ref[...], 0.0).astype(jnp.bfloat16)
    # fc2: (TB, H) bf16 @ (H, C_pad) bf16 -> f32 accum, + bias (f32).
    out = jnp.dot(h, w2_ref[...], preferred_element_type=jnp.float32)
    o_ref[...] = (out + b2_ref[...]).astype(o_ref.dtype)


def prepare_params(w1, b1, w2, b2):
    """One-time (hoisted) weight prep: pad class dim to 128 lanes, cast to bf16.

    Returns ((w1_bf, b1_f, w2_p, b2_p), num_classes).  Zero-padded class
    columns contribute nothing and are sliced off in the forward.
    """
    E, H = w1.shape
    C = w2.shape[1]
    C_pad = _round_up(C, _LANE)
    w1_bf = w1.astype(jnp.bfloat16)
    b1_f = b1.reshape(1, H).astype(jnp.float32)
    w2_p = jnp.zeros((H, C_pad), jnp.bfloat16).at[:, :C].set(w2.astype(jnp.bfloat16))
    b2_p = jnp.zeros((1, C_pad), jnp.float32).at[0, :C].set(b2.astype(jnp.float32))
    return (w1_bf, b1_f, w2_p, b2_p), C


@functools.partial(jax.jit, static_argnames=("num_classes",))
def embedding_classifier_forward(x, w1_bf, b1_f, w2_p, b2_p, *, num_classes):
    """x: (B, E) f32; params from prepare_params().  Returns (B, C) f32 logits."""
    B, E = x.shape
    H = w1_bf.shape[1]
    C_pad = w2_p.shape[1]

    # ---- chip-aware batch tiling (all static / trace-time) ------------------
    cores = _tensorcores_per_chip()
    max_tb = 512  # keeps x/out tiles tiny vs VMEM even when double-buffered
    per_core_rows = pl.cdiv(B, cores) if cores > 1 else B
    tb = min(max_tb, _round_up(max(per_core_rows, 16), 16))
    B_pad = _round_up(B, tb)
    n_steps = B_pad // tb

    # Only materialize an x padding copy when actually needed.
    x_p = x if B_pad == B else jnp.zeros((B_pad, E), x.dtype).at[:B].set(x)

    resident = dict(pipeline_mode=pl.Buffered(1))  # constant index_map operands

    out = pl.pallas_call(
        _mlp_kernel,
        out_shape=jax.ShapeDtypeStruct((B_pad, C_pad), jnp.float32),
        grid_spec=pltpu.PrefetchScalarGridSpec(
            num_scalar_prefetch=0,
            grid=(n_steps,),
            in_specs=[
                pl.BlockSpec((tb, E), lambda i: (i, 0)),                  # x tile
                pl.BlockSpec((E, H), lambda i: (0, 0), **resident),       # W1
                pl.BlockSpec((1, H), lambda i: (0, 0), **resident),       # b1
                pl.BlockSpec((H, C_pad), lambda i: (0, 0), **resident),   # W2
                pl.BlockSpec((1, C_pad), lambda i: (0, 0), **resident),   # b2
            ],
            out_specs=pl.BlockSpec((tb, C_pad), lambda i: (i, 0)),
        ),
        compiler_params=pltpu.CompilerParams(
            # Batch tiles are independent -> sharded across both TCs on v7x;
            # on v5e/v6e the grid is a single step anyway.
            dimension_semantics=("parallel",),
        ),
    )(x_p, w1_bf, b1_f, w2_p, b2_p)

    # Strip batch / class padding.
    return out[:B, :num_classes]


def init_params(key, embedding_dim=512, hidden=256, num_classes=10):
    """Deterministic init mimicking nn.Linear default (uniform +-1/sqrt(fan_in))."""
    k1, k2, k3, k4 = jax.random.split(key, 4)
    bound1 = 1.0 / jnp.sqrt(embedding_dim)
    bound2 = 1.0 / jnp.sqrt(hidden)
    w1 = jax.random.uniform(k1, (embedding_dim, hidden), jnp.float32, -bound1, bound1)
    b1 = jax.random.uniform(k2, (hidden,), jnp.float32, -bound1, bound1)
    w2 = jax.random.uniform(k3, (hidden, num_classes), jnp.float32, -bound2, bound2)
    b2 = jax.random.uniform(k4, (num_classes,), jnp.float32, -bound2, bound2)
    return w1, b1, w2, b2


if __name__ == "__main__":
    key = jax.random.PRNGKey(0)
    k_x, k_p = jax.random.split(key)

    # Module-implied dims: embedding_dim=512, hidden=256, num_classes=10.
    # B=256 fills the MXU M dim in the single-step case and exercises the
    # 2-tile parallel grid on v7x.
    B, E, H, C = 256, 512, 256, 10
    x = jax.random.normal(k_x, (B, E), jnp.float32)
    w1, b1, w2, b2 = init_params(k_p, embedding_dim=E, hidden=H, num_classes=C)

    # Hoisted weight prep: done once, outside the forward path.
    params, num_classes = prepare_params(w1, b1, w2, b2)

    logits = embedding_classifier_forward(x, *params, num_classes=num_classes)
    logits = jax.block_until_ready(logits)

    # Reference in plain JAX f32 (same math as the PyTorch forward).  Tolerance
    # relaxed because the kernel runs the matmuls with bf16 operands
    # (f32 accumulation preserved via preferred_element_type).
    ref = jnp.maximum(x @ w1 + b1, 0.0) @ w2 + b2
    assert logits.shape == (B, C)
    assert jnp.allclose(logits, ref, atol=2e-2, rtol=2e-2), (
        float(jnp.max(jnp.abs(logits - ref))))

    print("KERNEL_OK")
</pallas_src>

<mosaic_0001>
module attributes {stable_mosaic.version = 11 : i64} {
  func.func @_mlp_kernel(%arg0: i32, %arg1: memref<256x512xf32, #tpu.memory_space<vmem>>, %arg2: memref<512x256xbf16, #tpu.memory_space<vmem>>, %arg3: memref<1x256xf32, #tpu.memory_space<vmem>>, %arg4: memref<256x128xbf16, #tpu.memory_space<vmem>>, %arg5: memref<1x128xf32, #tpu.memory_space<vmem>>, %arg6: memref<256x128xf32, #tpu.memory_space<vmem>>) attributes {dimension_semantics = [#tpu.dimension_semantics<parallel>], iteration_bounds = array<i64: 1>, scalar_prefetch = 0 : i64, scratch_operands = 0 : i64, tpu.core_type = #tpu.core_type<tc>, window_params = [{transform_indices = @transform_0, window_bounds = array<i64: 256, 512>}, {pipeline_mode = #tpu.pipeline_mode<synchronous>, transform_indices = @transform_1, window_bounds = array<i64: 512, 256>}, {pipeline_mode = #tpu.pipeline_mode<synchronous>, transform_indices = @transform_2, window_bounds = array<i64: 1, 256>}, {pipeline_mode = #tpu.pipeline_mode<synchronous>, transform_indices = @transform_3, window_bounds = array<i64: 256, 128>}, {pipeline_mode = #tpu.pipeline_mode<synchronous>, transform_indices = @transform_4, window_bounds = array<i64: 1, 128>}, {transform_indices = @transform_5, window_bounds = array<i64: 256, 128>}]} {
    %c0 = arith.constant 0 : index
    %c0_0 = arith.constant 0 : index
    %0 = vector.load %arg1[%c0, %c0_0] : memref<256x512xf32, #tpu.memory_space<vmem>>, vector<256x512xf32>
    %1 = arith.truncf %0 : vector<256x512xf32> to vector<256x512xbf16>
    %c0_1 = arith.constant 0 : index
    %c0_2 = arith.constant 0 : index
    %2 = vector.load %arg2[%c0_1, %c0_2] : memref<512x256xbf16, #tpu.memory_space<vmem>>, vector<512x256xbf16>
    %cst = arith.constant dense<0.000000e+00> : vector<256x256xf32>
    %3 = tpu.matmul %1, %2, %cst {dimension_numbers = #tpu.dot_dimension_numbers<[1], [0], [0], [1], [0, 0, 1, 1], [], []>} : vector<256x512xbf16>, vector<512x256xbf16>, vector<256x256xf32> -> vector<256x256xf32>
    %c0_3 = arith.constant 0 : index
    %c0_4 = arith.constant 0 : index
    %4 = vector.load %arg3[%c0_3, %c0_4] : memref<1x256xf32, #tpu.memory_space<vmem>>, vector<1x256xf32>
    %5 = vector.broadcast %4 : vector<1x256xf32> to vector<256x256xf32>
    %6 = arith.addf %3, %5 : vector<256x256xf32>
    %cst_5 = arith.constant 0.000000e+00 : f32
    %7 = vector.broadcast %cst_5 : f32 to vector<256x256xf32>
    %8 = arith.maximumf %6, %7 : vector<256x256xf32>
    %9 = arith.truncf %8 : vector<256x256xf32> to vector<256x256xbf16>
    %c0_6 = arith.constant 0 : index
    %c0_7 = arith.constant 0 : index
    %10 = vector.load %arg4[%c0_6, %c0_7] : memref<256x128xbf16, #tpu.memory_space<vmem>>, vector<256x128xbf16>
    %cst_8 = arith.constant dense<0.000000e+00> : vector<256x128xf32>
    %11 = tpu.matmul %9, %10, %cst_8 {dimension_numbers = #tpu.dot_dimension_numbers<[1], [0], [0], [1], [0, 0, 1, 1], [], []>} : vector<256x256xbf16>, vector<256x128xbf16>, vector<256x128xf32> -> vector<256x128xf32>
    %c0_9 = arith.constant 0 : index
    %c0_10 = arith.constant 0 : index
    %12 = vector.load %arg5[%c0_9, %c0_10] : memref<1x128xf32, #tpu.memory_space<vmem>>, vector<1x128xf32>
    %13 = vector.broadcast %12 : vector<1x128xf32> to vector<256x128xf32>
    %14 = arith.addf %11, %13 : vector<256x128xf32>
    %c0_11 = arith.constant 0 : index
    %c0_12 = arith.constant 0 : index
    %15 = vector.load %arg6[%c0_11, %c0_12] : memref<256x128xf32, #tpu.memory_space<vmem>>, vector<256x128xf32>
    tpu.vector_store %arg6[%c0_11, %c0_12], %14 {strides = array<i32>} : memref<256x128xf32, #tpu.memory_space<vmem>>, vector<256x128xf32>,
    return
  }
  func.func @transform_0(%arg0: i32) -> (i32, i32) {
    %c0_i32 = arith.constant 0 : i32
    %c0_i32_0 = arith.constant 0 : i32
    return %arg0, %c0_i32 : i32, i32
  }
  func.func @transform_1(%arg0: i32) -> (i32, i32) {
    %c0_i32 = arith.constant 0 : i32
    %c0_i32_0 = arith.constant 0 : i32
    %c0_i32_1 = arith.constant 0 : i32
    return %c0_i32, %c0_i32_0 : i32, i32
  }
  func.func @transform_2(%arg0: i32) -> (i32, i32) {
    %c0_i32 = arith.constant 0 : i32
    %c0_i32_0 = arith.constant 0 : i32
    %c0_i32_1 = arith.constant 0 : i32
    return %c0_i32, %c0_i32_0 : i32, i32
  }
  func.func @transform_3(%arg0: i32) -> (i32, i32) {
    %c0_i32 = arith.constant 0 : i32
    %c0_i32_0 = arith.constant 0 : i32
    %c0_i32_1 = arith.constant 0 : i32
    return %c0_i32, %c0_i32_0 : i32, i32
  }
  func.func @transform_4(%arg0: i32) -> (i32, i32) {
    %c0_i32 = arith.constant 0 : i32
    %c0_i32_0 = arith.constant 0 : i32
    %c0_i32_1 = arith.constant 0 : i32
    return %c0_i32, %c0_i32_0 : i32, i32
  }
  func.func @transform_5(%arg0: i32) -> (i32, i32) {
    %c0_i32 = arith.constant 0 : i32
    %c0_i32_0 = arith.constant 0 : i32
    return %arg0, %c0_i32 : i32, i32
  }
}

</mosaic_0001>

<llo_original>
// kernel: embedding_classifier_forward.1
$region0: #{embedding_classifier_forward.1}
  #allocation0 [shape = 'u32[]', space=smem, size = 0x4, offset = 0x4, fixed_abs, tag = 'smem constant byte address 0x4 - core index']
  #allocation1 [shape = 'u32[144,128]{1,0:T(1,128)}', space=vmem, size = 0x12000, scoped, tag = 'internal scratch']
  %s0 = inlined_call_operand.hbm [shape: f32[256,512], index: 0, kind: input, shape index: {}]
  %s1 = inlined_call_operand.hbm [shape: bf16[512,256], index: 1, kind: input, shape index: {}]
  %s2 = inlined_call_operand.vmem [shape: f32[1,256], index: 2, kind: input, shape index: {}]
  %s3 = inlined_call_operand.hbm [shape: bf16[256,128], index: 3, kind: input, shape index: {}]
  %s4 = inlined_call_operand.vmem [shape: f32[1,128], index: 4, kind: input, shape index: {}]
  %s5 = inlined_call_operand.vmem [shape: f32[256,128], index: 5, kind: output, shape index: {}]
  %s6 = sld [smem:[#allocation0]]
  $region42: #{embedding_classifier_forward.1} parent=0
    _
  %s8 = ssub.s32 1, %s6
  %s9 = scalar_select 0, %s8, %s6
  $region1: #{embedding_classifier_forward.1} parent=0
    #allocation2 [shape = 'u8[524288]{0}', space=vmem, size = 0x80000, scoped, tag = 'input window, operand 0, single buffered']
    #allocation3 [shape = 's32[1]{0}', space=sflag, size = 0x4, scoped, tag = 'scoped memory for embedding_classifier_forward.1']
    #allocation4 [shape = 'u8[262144]{0}', space=vmem, size = 0x40000, scoped, tag = 'input window, operand 1, single buffered']
    #allocation5 [shape = 's32[1]{0}', space=sflag, size = 0x4, scoped, tag = 'scoped memory for embedding_classifier_forward.1']
    #allocation6 [shape = 'u8[65536]{0}', space=vmem, size = 0x10000, scoped, tag = 'input window, operand 3, single buffered']
    %10 = vsyncpa [#allocation3], 0
    %11 = vsyncpa [#allocation5], 0
    // Predicated region
    $region2: #{embedding_classifier_forward.1} parent=1 // pred_check
      _
    $region3: #{embedding_classifier_forward.1} parent=1 // pred_check_branch
      %13 = sbr.rel (0) target = $region5
    $region4: #{embedding_classifier_forward.1} parent=1 // pred_region
      %s15 = ssub.s32 16384, 16384
      %16 = vsyncadd [#allocation3], %s15
      %s17 = sshll.u32 [#allocation2], 4
      %s18 = int_to_ptr.vmem [resolvable:$true] %s17
      %23 = dma.hbm_to_vmem [thread:$0]  %s0, 16384, %s18, [#allocation3], 512, 512, 32
    $region5: #{embedding_classifier_forward.1} parent=1 // pred_fallthru
      _
    // Predicated region
    $region6: #{embedding_classifier_forward.1} parent=1 // pred_check
      _
    $region7: #{embedding_classifier_forward.1} parent=1 // pred_check_branch
      %25 = sbr.rel (0) target = $region9
    $region8: #{embedding_classifier_forward.1} parent=1 // pred_region
      %s27 = ssub.s32 8192, 8192
      %28 = vsyncadd [#allocation5], %s27
      %s29 = sshll.u32 [#allocation4], 4
      %s30 = int_to_ptr.vmem [resolvable:$true] %s29
      %35 = dma.hbm_to_vmem [thread:$0]  %s1, 8192, %s30, [#allocation5], 128, 128, 8
    $region9: #{embedding_classifier_forward.1} parent=1 // pred_fallthru
      _
    // Predicated region
    $region10: #{embedding_classifier_forward.1} parent=1 // pred_check
      _
    $region11: #{embedding_classifier_forward.1} parent=1 // pred_check_branch
      %37 = sbr.rel (0) target = $region13
    $region12: #{embedding_classifier_forward.1} parent=1 // pred_region
      _
    $region13: #{embedding_classifier_forward.1} parent=1 // pred_fallthru
      _
    // Predicated region
    $region14: #{embedding_classifier_forward.1} parent=1 // pred_check
      _
    $region15: #{embedding_classifier_forward.1} parent=1 // pred_check_branch
      %39 = sbr.rel (0) target = $region17
    $region16: #{embedding_classifier_forward.1} parent=1 // pred_region
      %s41 = ssub.s32 2048, 2048
      %42 = vsyncadd [#allocation5], %s41
      %s43 = sshll.u32 [#allocation6], 4
      %s44 = int_to_ptr.vmem [resolvable:$true] %s43
      %49 = dma.hbm_to_vmem [thread:$0]  %s3, 2048, %s44, [#allocation5], 64, 64, 4
    $region17: #{embedding_classifier_forward.1} parent=1 // pred_fallthru
      _
    // Predicated region
    $region18: #{embedding_classifier_forward.1} parent=1 // pred_check
      _
    $region19: #{embedding_classifier_forward.1} parent=1 // pred_check_branch
      %51 = sbr.rel (0) target = $region21
    $region20: #{embedding_classifier_forward.1} parent=1 // pred_region
      _
    $region21: #{embedding_classifier_forward.1} parent=1 // pred_fallthru
      _
    // Predicated region
    $region22: #{embedding_classifier_forward.1} parent=1 // pred_check
      _
    $region23: #{embedding_classifier_forward.1} parent=1 // pred_check_branch
      %53 = sbr.rel (0) target = $region25
    $region24: #{embedding_classifier_forward.1} parent=1 // pred_region
      %54 = dma.done [#allocation3], 16384
    $region25: #{embedding_classifier_forward.1} parent=1 // pred_fallthru
      _
    // Predicated region
    $region26: #{embedding_classifier_forward.1} parent=1 // pred_check
      _
    $region27: #{embedding_classifier_forward.1} parent=1 // pred_check_branch
      %56 = sbr.rel (0) target = $region29
    $region28: #{embedding_classifier_forward.1} parent=1 // pred_region
      %57 = dma.done [#allocation5], 8192
    $region29: #{embedding_classifier_forward.1} parent=1 // pred_fallthru
      _
    // Predicated region
    $region30: #{embedding_classifier_forward.1} parent=1 // pred_check
      _
    $region31: #{embedding_classifier_forward.1} parent=1 // pred_check_branch
      %59 = sbr.rel (0) target = $region33
    $region32: #{embedding_classifier_forward.1} parent=1 // pred_region
      %60 = dma.done [#allocation5], 2048
    $region33: #{embedding_classifier_forward.1} parent=1 // pred_fallthru
      _
    %v62 = vld [vmem:[#allocation2] sm:$0xff]
    %v63 = vld [vmem:[#allocation2 + $0x8] sm:$0xff]
    %v64 = vld [vmem:[#allocation2 + $0x10] sm:$0xff]
    %v65 = vld [vmem:[#allocation2 + $0x18] sm:$0xff]
    %v66 = vld [vmem:[#allocation2 + $0x20] sm:$0xff]
    %v67 = vld [vmem:[#allocation2 + $0x28] sm:$0xff]
    %v68 = vld [vmem:[#allocation2 + $0x30] sm:$0xff]
    %v69 = vld [vmem:[#allocation2 + $0x38] sm:$0xff]
    %v70 = vld [vmem:[#allocation2 + $0x40] sm:$0xff]
    %v71 = vld [vmem:[#allocation2 + $0x48] sm:$0xff]
    %v72 = vld [vmem:[#allocation2 + $0x50] sm:$0xff]
    %v73 = vld [vmem:[#allocation2 + $0x58] sm:$0xff]
    %v74 = vld [vmem:[#allocation2 + $0x60] sm:$0xff]
    %v75 = vld [vmem:[#allocation2 + $0x68] sm:$0xff]
    %v76 = vld [vmem:[#allocation2 + $0x70] sm:$0xff]
    %v77 = vld [vmem:[#allocation2 + $0x78] sm:$0xff]
    %v78 = vld [vmem:[#allocation2 + $0x80] sm:$0xff]
    %v79 = vld [vmem:[#allocation2 + $0x88] sm:$0xff]
    %v80 = vld [vmem:[#allocation2 + $0x90] sm:$0xff]
    %v81 = vld [vmem:[#allocation2 + $0x98] sm:$0xff]
    %v82 = vld [vmem:[#allocation2 + $0xa0] sm:$0xff]
    %v83 = vld [vmem:[#allocation2 + $0xa8] sm:$0xff]
    %v84 = vld [vmem:[#allocation2 + $0xb0] sm:$0xff]
    %v85 = vld [vmem:[#allocation2 + $0xb8] sm:$0xff]
    %v86 = vld [vmem:[#allocation2 + $0xc0] sm:$0xff]
    %v87 = vld [vmem:[#allocation2 + $0xc8] sm:$0xff]
    %v88 = vld [vmem:[#allocation2 + $0xd0] sm:$0xff]
    %v89 = vld [vmem:[#allocation2 + $0xd8] sm:$0xff]
    %v90 = vld [vmem:[#allocation2 + $0xe0] sm:$0xff]
    %v91 = vld [vmem:[#allocation2 + $0xe8] sm:$0xff]
    %v92 = vld [vmem:[#allocation2 + $0xf0] sm:$0xff]
    %v93 = vld [vmem:[#allocation2 + $0xf8] sm:$0xff]
    %v94 = vld [vmem:[#allocation2 + $0x100] sm:$0xff]
    %v95 = vld [vmem:[#allocation2 + $0x108] sm:$0xff]
    %v96 = vld [vmem:[#allocation2 + $0x110] sm:$0xff]
    %v97 = vld [vmem:[#allocation2 + $0x118] sm:$0xff]
    %v98 = vld [vmem:[#allocation2 + $0x120] sm:$0xff]
    %v99 = vld [vmem:[#allocation2 + $0x128] sm:$0xff]
    %v100 = vld [vmem:[#allocation2 + $0x130] sm:$0xff]
    %v101 = vld [vmem:[#allocation2 + $0x138] sm:$0xff]
    %v102 = vld [vmem:[#allocation2 + $0x140] sm:$0xff]
    %v103 = vld [vmem:[#allocation2 + $0x148] sm:$0xff]
    %v104 = vld [vmem:[#allocation2 + $0x150] sm:$0xff]
    %v105 = vld [vmem:[#allocation2 + $0x158] sm:$0xff]
    %v106 = vld [vmem:[#allocation2 + $0x160] sm:$0xff]
    %v107 = vld [vmem:[#allocation2 + $0x168] sm:$0xff]
    %v108 = vld [vmem:[#allocation2 + $0x170] sm:$0xff]
    %v109 = vld [vmem:[#allocation2 + $0x178] sm:$0xff]
    %v110 = vld [vmem:[#allocation2 + $0x180] sm:$0xff]
    %v111 = vld [vmem:[#allocation2 + $0x188] sm:$0xff]
    %v112 = vld [vmem:[#allocation2 + $0x190] sm:$0xff]
    %v113 = vld [vmem:[#allocation2 + $0x198] sm:$0xff]
    %v114 = vld [vmem:[#allocation2 + $0x1a0] sm:$0xff]
    %v115 = vld [vmem:[#allocation2 + $0x1a8] sm:$0xff]
    %v116 = vld [vmem:[#allocation2 + $0x1b0] sm:$0xff]
    %v117 = vld [vmem:[#allocation2 + $0x1b8] sm:$0xff]
    %v118 = vld [vmem:[#allocation2 + $0x1c0] sm:$0xff]
    %v119 = vld [vmem:[#allocation2 + $0x1c8] sm:$0xff]
    %v120 = vld [vmem:[#allocation2 + $0x1d0] sm:$0xff]
    %v121 = vld [vmem:[#allocation2 + $0x1d8] sm:$0xff]
    %v122 = vld [vmem:[#allocation2 + $0x1e0] sm:$0xff]
    %v123 = vld [vmem:[#allocation2 + $0x1e8] sm:$0xff]
    %v124 = vld [vmem:[#allocation2 + $0x1f0] sm:$0xff]
    %v125 = vld [vmem:[#allocation2 + $0x1f8] sm:$0xff]
    %v126 = vld [vmem:[#allocation2 + $0x200] sm:$0xff]
    %v127 = vld [vmem:[#allocation2 + $0x208] sm:$0xff]
    %v128 = vld [vmem:[#allocation2 + $0x210] sm:$0xff]
    %v129 = vld [vmem:[#allocation2 + $0x218] sm:$0xff]
    %v130 = vld [vmem:[#allocation2 + $0x220] sm:$0xff]
    %v131 = vld [vmem:[#allocation2 + $0x228] sm:$0xff]
    %v132 = vld [vmem:[#allocation2 + $0x230] sm:$0xff]
    %v133 = vld [vmem:[#allocation2 + $0x238] sm:$0xff]
    %v134 = vld [vmem:[#allocation2 + $0x240] sm:$0xff]
    %v135 = vld [vmem:[#allocation2 + $0x248] sm:$0xff]
    %v136 = vld [vmem:[#allocation2 + $0x250] sm:$0xff]
    %v137 = vld [vmem:[#allocation2 + $0x258] sm:$0xff]
    %v138 = vld [vmem:[#allocation2 + $0x260] sm:$0xff]
    %v139 = vld [vmem:[#allocation2 + $0x268] sm:$0xff]
    %v140 = vld [vmem:[#allocation2 + $0x270] sm:$0xff]
    %v141 = vld [vmem:[#allocation2 + $0x278] sm:$0xff]
    %v142 = vld [vmem:[#allocation2 + $0x280] sm:$0xff]
    %v143 = vld [vmem:[#allocation2 + $0x288] sm:$0xff]
    %v144 = vld [vmem:[#allocation2 + $0x290] sm:$0xff]
    %v145 = vld [vmem:[#allocation2 + $0x298] sm:$0xff]
    %v146 = vld [vmem:[#allocation2 + $0x2a0] sm:$0xff]
    %v147 = vld [vmem:[#allocation2 + $0x2a8] sm:$0xff]
    %v148 = vld [vmem:[#allocation2 + $0x2b0] sm:$0xff]
    %v149 = vld [vmem:[#allocation2 + $0x2b8] sm:$0xff]
    %v150 = vld [vmem:[#allocation2 + $0x2c0] sm:$0xff]
    %v151 = vld [vmem:[#allocation2 + $0x2c8] sm:$0xff]
    %v152 = vld [vmem:[#allocation2 + $0x2d0] sm:$0xff]
    %v153 = vld [vmem:[#allocation2 + $0x2d8] sm:$0xff]
    %v154 = vld [vmem:[#allocation2 + $0x2e0] sm:$0xff]
    %v155 = vld [vmem:[#allocation2 + $0x2e8] sm:$0xff]
    %v156 = vld [vmem:[#allocation2 + $0x2f0] sm:$0xff]
    %v157 = vld [vmem:[#allocation2 + $0x2f8] sm:$0xff]
    %v158 = vld [vmem:[#allocation2 + $0x300] sm:$0xff]
    %v159 = vld [vmem:[#allocation2 + $0x308] sm:$0xff]
    %v160 = vld [vmem:[#allocation2 + $0x310] sm:$0xff]
    %v161 = vld [vmem:[#allocation2 + $0x318] sm:$0xff]
    %v162 = vld [vmem:[#allocation2 + $0x320] sm:$0xff]
    %v163 = vld [vmem:[#allocation2 + $0x328] sm:$0xff]
    %v164 = vld [vmem:[#allocation2 + $0x330] sm:$0xff]
    %v165 = vld [vmem:[#allocation2 + $0x338] sm:$0xff]
    %v166 = vld [vmem:[#allocation2 + $0x340] sm:$0xff]
    %v167 = vld [vmem:[#allocation2 + $0x348] sm:$0xff]
    %v168 = vld [vmem:[#allocation2 + $0x350] sm:$0xff]
    %v169 = vld [vmem:[#allocation2 + $0x358] sm:$0xff]
    %v170 = vld [vmem:[#allocation2 + $0x360] sm:$0xff]
    %v171 = vld [vmem:[#allocation2 + $0x368] sm:$0xff]
    %v172 = vld [vmem:[#allocation2 + $0x370] sm:$0xff]
    %v173 = vld [vmem:[#allocation2 + $0x378] sm:$0xff]
    %v174 = vld [vmem:[#allocation2 + $0x380] sm:$0xff]
    %v175 = vld [vmem:[#allocation2 + $0x388] sm:$0xff]
    %v176 = vld [vmem:[#allocation2 + $0x390] sm:$0xff]
    %v177 = vld [vmem:[#allocation2 + $0x398] sm:$0xff]
    %v178 = vld [vmem:[#allocation2 + $0x3a0] sm:$0xff]
    %v179 = vld [vmem:[#allocation2 + $0x3a8] sm:$0xff]
    %v180 = vld [vmem:[#allocation2 + $0x3b0] sm:$0xff]
    %v181 = vld [vmem:[#allocation2 + $0x3b8] sm:$0xff]
    %v182 = vld [vmem:[#allocation2 + $0x3c0] sm:$0xff]
    %v183 = vld [vmem:[#allocation2 + $0x3c8] sm:$0xff]
    %v184 = vld [vmem:[#allocation2 + $0x3d0] sm:$0xff]
    %v185 = vld [vmem:[#allocation2 + $0x3d8] sm:$0xff]
    %v186 = vld [vmem:[#allocation2 + $0x3e0] sm:$0xff]
    %v187 = vld [vmem:[#allocation2 + $0x3e8] sm:$0xff]
    %v188 = vld [vmem:[#allocation2 + $0x3f0] sm:$0xff]
    %v189 = vld [vmem:[#allocation2 + $0x3f8] sm:$0xff]
    %v190 = vpack.c.bf16 %v66, %v62
    %v191 = vpack.c.bf16 %v67, %v63
    %v192 = vpack.c.bf16 %v68, %v64
    %v193 = vpack.c.bf16 %v69, %v65
    %v194 = vpack.c.bf16 %v74, %v70
    %v195 = vpack.c.bf16 %v75, %v71
    %v196 = vpack.c.bf16 %v76, %v72
    %v197 = vpack.c.bf16 %v77, %v73
    %v198 = vpack.c.bf16 %v82, %v78
    %v199 = vpack.c.bf16 %v83, %v79
    %v200 = vpack.c.bf16 %v84, %v80
    %v201 = vpack.c.bf16 %v85, %v81
    %v202 = vpack.c.bf16 %v90, %v86
    %v203 = vpack.c.bf16 %v91, %v87
    %v204 = vpack.c.bf16 %v92, %v88
    %v205 = vpack.c.bf16 %v93, %v89
    %v206 = vpack.c.bf16 %v98, %v94
    %v207 = vpack.c.bf16 %v99, %v95
    %v208 = vpack.c.bf16 %v100, %v96
    %v209 = vpack.c.bf16 %v101, %v97
    %v210 = vpack.c.bf16 %v106, %v102
    %v211 = vpack.c.bf16 %v107, %v103
    %v212 = vpack.c.bf16 %v108, %v104
    %v213 = vpack.c.bf16 %v109, %v105
    %v214 = vpack.c.bf16 %v114, %v110
    %v215 = vpack.c.bf16 %v115, %v111
    %v216 = vpack.c.bf16 %v116, %v112
    %v217 = vpack.c.bf16 %v117, %v113
    %v218 = vpack.c.bf16 %v122, %v118
    %v219 = vpack.c.bf16 %v123, %v119
    %v220 = vpack.c.bf16 %v124, %v120
    %v221 = vpack.c.bf16 %v125, %v121
    %v222 = vpack.c.bf16 %v130, %v126
    %v223 = vpack.c.bf16 %v131, %v127
    %v224 = vpack.c.bf16 %v132, %v128
    %v225 = vpack.c.bf16 %v133, %v129
    %v226 = vpack.c.bf16 %v138, %v134
    %v227 = vpack.c.bf16 %v139, %v135
    %v228 = vpack.c.bf16 %v140, %v136
    %v229 = vpack.c.bf16 %v141, %v137
    %v230 = vpack.c.bf16 %v146, %v142
    %v231 = vpack.c.bf16 %v147, %v143
    %v232 = vpack.c.bf16 %v148, %v144
    %v233 = vpack.c.bf16 %v149, %v145
    %v234 = vpack.c.bf16 %v154, %v150
    %v235 = vpack.c.bf16 %v155, %v151
    %v236 = vpack.c.bf16 %v156, %v152
    %v237 = vpack.c.bf16 %v157, %v153
    %v238 = vpack.c.bf16 %v162, %v158
    %v239 = vpack.c.bf16 %v163, %v159
    %v240 = vpack.c.bf16 %v164, %v160
    %v241 = vpack.c.bf16 %v165, %v161
    %v242 = vpack.c.bf16 %v170, %v166
    %v243 = vpack.c.bf16 %v171, %v167
    %v244 = vpack.c.bf16 %v172, %v168
    %v245 = vpack.c.bf16 %v173, %v169
    %v246 = vpack.c.bf16 %v178, %v174
    %v247 = vpack.c.bf16 %v179, %v175
    %v248 = vpack.c.bf16 %v180, %v176
    %v249 = vpack.c.bf16 %v181, %v177
    %v250 = vpack.c.bf16 %v186, %v182
    %v251 = vpack.c.bf16 %v187, %v183
    %v252 = vpack.c.bf16 %v188, %v184
    %v253 = vpack.c.bf16 %v189, %v185
    %v254 = vld [vmem:[#allocation4] sm:$0xff]
    %v255 = vld [vmem:[#allocation4 + $0x8] sm:$0xff]
    %v256 = vld [vmem:[#allocation4 + $0x10] sm:$0xff]
    %v257 = vld [vmem:[#allocation4 + $0x18] sm:$0xff]
    %v258 = vld [vmem:[#allocation4 + $0x20] sm:$0xff]
    %v259 = vld [vmem:[#allocation4 + $0x28] sm:$0xff]
    %v260 = vld [vmem:[#allocation4 + $0x30] sm:$0xff]
    %v261 = vld [vmem:[#allocation4 + $0x38] sm:$0xff]
    %v262 = vld [vmem:[#allocation4 + $0x40] sm:$0xff]
    %v263 = vld [vmem:[#allocation4 + $0x48] sm:$0xff]
    %v264 = vld [vmem:[#allocation4 + $0x50] sm:$0xff]
    %v265 = vld [vmem:[#allocation4 + $0x58] sm:$0xff]
    %v266 = vld [vmem:[#allocation4 + $0x60] sm:$0xff]
    %v267 = vld [vmem:[#allocation4 + $0x68] sm:$0xff]
    %v268 = vld [vmem:[#allocation4 + $0x70] sm:$0xff]
    %v269 = vld [vmem:[#allocation4 + $0x78] sm:$0xff]
    %v270 = vld [vmem:[#allocation4 + $0x80] sm:$0xff]
    %v271 = vld [vmem:[#allocation4 + $0x88] sm:$0xff]
    %v272 = vld [vmem:[#allocation4 + $0x90] sm:$0xff]
    %v273 = vld [vmem:[#allocation4 + $0x98] sm:$0xff]
    %v274 = vld [vmem:[#allocation4 + $0xa0] sm:$0xff]
    %v275 = vld [vmem:[#allocation4 + $0xa8] sm:$0xff]
    %v276 = vld [vmem:[#allocation4 + $0xb0] sm:$0xff]
    %v277 = vld [vmem:[#allocation4 + $0xb8] sm:$0xff]
    %v278 = vld [vmem:[#allocation4 + $0xc0] sm:$0xff]
    %v279 = vld [vmem:[#allocation4 + $0xc8] sm:$0xff]
    %v280 = vld [vmem:[#allocation4 + $0xd0] sm:$0xff]
    %v281 = vld [vmem:[#allocation4 + $0xd8] sm:$0xff]
    %v282 = vld [vmem:[#allocation4 + $0xe0] sm:$0xff]
    %v283 = vld [vmem:[#allocation4 + $0xe8] sm:$0xff]
    %v284 = vld [vmem:[#allocation4 + $0xf0] sm:$0xff]
    %v285 = vld [vmem:[#allocation4 + $0xf8] sm:$0xff]
    %v286 = vld [vmem:[#allocation4 + $0x100] sm:$0xff]
    %v287 = vld [vmem:[#allocation4 + $0x108] sm:$0xff]
    %v288 = vld [vmem:[#allocation4 + $0x110] sm:$0xff]
    %v289 = vld [vmem:[#allocation4 + $0x118] sm:$0xff]
    %v290 = vld [vmem:[#allocation4 + $0x120] sm:$0xff]
    %v291 = vld [vmem:[#allocation4 + $0x128] sm:$0xff]
    %v292 = vld [vmem:[#allocation4 + $0x130] sm:$0xff]
    %v293 = vld [vmem:[#allocation4 + $0x138] sm:$0xff]
    %v294 = vld [vmem:[#allocation4 + $0x140] sm:$0xff]
    %v295 = vld [vmem:[#allocation4 + $0x148] sm:$0xff]
    %v296 = vld [vmem:[#allocation4 + $0x150] sm:$0xff]
    %v297 = vld [vmem:[#allocation4 + $0x158] sm:$0xff]
    %v298 = vld [vmem:[#allocation4 + $0x160] sm:$0xff]
    %v299 = vld [vmem:[#allocation4 + $0x168] sm:$0xff]
    %v300 = vld [vmem:[#allocation4 + $0x170] sm:$0xff]
    %v301 = vld [vmem:[#allocation4 + $0x178] sm:$0xff]
    %v302 = vld [vmem:[#allocation4 + $0x180] sm:$0xff]
    %v303 = vld [vmem:[#allocation4 + $0x188] sm:$0xff]
    %v304 = vld [vmem:[#allocation4 + $0x190] sm:$0xff]
    %v305 = vld [vmem:[#allocation4 + $0x198] sm:$0xff]
    %v306 = vld [vmem:[#allocation4 + $0x1a0] sm:$0xff]
    %v307 = vld [vmem:[#allocation4 + $0x1a8] sm:$0xff]
    %v308 = vld [vmem:[#allocation4 + $0x1b0] sm:$0xff]
    %v309 = vld [vmem:[#allocation4 + $0x1b8] sm:$0xff]
    %v310 = vld [vmem:[#allocation4 + $0x1c0] sm:$0xff]
    %v311 = vld [vmem:[#allocation4 + $0x1c8] sm:$0xff]
    %v312 = vld [vmem:[#allocation4 + $0x1d0] sm:$0xff]
    %v313 = vld [vmem:[#allocation4 + $0x1d8] sm:$0xff]
    %v314 = vld [vmem:[#allocation4 + $0x1e0] sm:$0xff]
    %v315 = vld [vmem:[#allocation4 + $0x1e8] sm:$0xff]
    %v316 = vld [vmem:[#allocation4 + $0x1f0] sm:$0xff]
    %v317 = vld [vmem:[#allocation4 + $0x1f8] sm:$0xff]
    %v318 = vld [vmem:[%s2] sm:$0x3]
    %v320 = vlaneseq
    %v321 = vshrl.u32 %v320, 7
    %v322 = vsub.s32 0, %v321
    %v323 = vrot.slane %v318, %v322
    %v324 = vlaneseq
    %v325 = vshrl.u32 %v324, 7
    %v326 = vsub.s32 1, %v325
    %v327 = vrot.slane %v318, %v326
    %v394 = vunpack.c.l.b16 %v254
    %v395 = vunpack.c.h.b16 %v254
    %v396 = vunpack.c.l.b16 %v255
    %v397 = vunpack.c.h.b16 %v255
    %v398 = vunpack.c.l.b16 %v256
    %v399 = vunpack.c.h.b16 %v256
    %v400 = vunpack.c.l.b16 %v257
    %v401 = vunpack.c.h.b16 %v257
    %v402 = vunpack.c.l.b16 %v258
    %v403 = vunpack.c.h.b16 %v258
    %v404 = vunpack.c.l.b16 %v259
    %v405 = vunpack.c.h.b16 %v259
    %v406 = vunpack.c.l.b16 %v260
    %v407 = vunpack.c.h.b16 %v260
    %v408 = vunpack.c.l.b16 %v261
    %v409 = vunpack.c.h.b16 %v261
    %v410 = vunpack.c.l.b16 %v262
    %v411 = vunpack.c.h.b16 %v262
    %v412 = vunpack.c.l.b16 %v263
    %v413 = vunpack.c.h.b16 %v263
    %v414 = vunpack.c.l.b16 %v264
    %v415 = vunpack.c.h.b16 %v264
    %v416 = vunpack.c.l.b16 %v265
    %v417 = vunpack.c.h.b16 %v265
    %v418 = vunpack.c.l.b16 %v266
    %v419 = vunpack.c.h.b16 %v266
    %v420 = vunpack.c.l.b16 %v267
    %v421 = vunpack.c.h.b16 %v267
    %v422 = vunpack.c.l.b16 %v268
    %v423 = vunpack.c.h.b16 %v268
    %v424 = vunpack.c.l.b16 %v269
    %v425 = vunpack.c.h.b16 %v269
    %v426 = vunpack.c.l.b16 %v270
    %v427 = vunpack.c.h.b16 %v270
    %v428 = vunpack.c.l.b16 %v271
    %v429 = vunpack.c.h.b16 %v271
    %v430 = vunpack.c.l.b16 %v272
    %v431 = vunpack.c.h.b16 %v272
    %v432 = vunpack.c.l.b16 %v273
    %v433 = vunpack.c.h.b16 %v273
    %v434 = vunpack.c.l.b16 %v274
    %v435 = vunpack.c.h.b16 %v274
    %v436 = vunpack.c.l.b16 %v275
    %v437 = vunpack.c.h.b16 %v275
    %v438 = vunpack.c.l.b16 %v276
    %v439 = vunpack.c.h.b16 %v276
    %v440 = vunpack.c.l.b16 %v277
    %v441 = vunpack.c.h.b16 %v277
    %v442 = vunpack.c.l.b16 %v278
    %v443 = vunpack.c.h.b16 %v278
    %v444 = vunpack.c.l.b16 %v279
    %v445 = vunpack.c.h.b16 %v279
    %v446 = vunpack.c.l.b16 %v280
    %v447 = vunpack.c.h.b16 %v280
    %v448 = vunpack.c.l.b16 %v281
    %v449 = vunpack.c.h.b16 %v281
    %v450 = vunpack.c.l.b16 %v282
    %v451 = vunpack.c.h.b16 %v282
    %v452 = vunpack.c.l.b16 %v283
    %v453 = vunpack.c.h.b16 %v283
    %v454 = vunpack.c.l.b16 %v284
    %v455 = vunpack.c.h.b16 %v284
    %v456 = vunpack.c.l.b16 %v285
    %v457 = vunpack.c.h.b16 %v285
    %v458 = vunpack.c.l.b16 %v286
    %v459 = vunpack.c.h.b16 %v286
    %v460 = vunpack.c.l.b16 %v287
    %v461 = vunpack.c.h.b16 %v287
    %v462 = vunpack.c.l.b16 %v288
    %v463 = vunpack.c.h.b16 %v288
    %v464 = vunpack.c.l.b16 %v289
    %v465 = vunpack.c.h.b16 %v289
    %v466 = vunpack.c.l.b16 %v290
    %v467 = vunpack.c.h.b16 %v290
    %v468 = vunpack.c.l.b16 %v291
    %v469 = vunpack.c.h.b16 %v291
    %v470 = vunpack.c.l.b16 %v292
    %v471 = vunpack.c.h.b16 %v292
    %v472 = vunpack.c.l.b16 %v293
    %v473 = vunpack.c.h.b16 %v293
    %v474 = vunpack.c.l.b16 %v294
    %v475 = vunpack.c.h.b16 %v294
    %v476 = vunpack.c.l.b16 %v295
    %v477 = vunpack.c.h.b16 %v295
    %v478 = vunpack.c.l.b16 %v296
    %v479 = vunpack.c.h.b16 %v296
    %v480 = vunpack.c.l.b16 %v297
    %v481 = vunpack.c.h.b16 %v297
    %v482 = vunpack.c.l.b16 %v298
    %v483 = vunpack.c.h.b16 %v298
    %v484 = vunpack.c.l.b16 %v299
    %v485 = vunpack.c.h.b16 %v299
    %v486 = vunpack.c.l.b16 %v300
    %v487 = vunpack.c.h.b16 %v300
    %v488 = vunpack.c.l.b16 %v301
    %v489 = vunpack.c.h.b16 %v301
    %v490 = vunpack.c.l.b16 %v302
    %v491 = vunpack.c.h.b16 %v302
    %v492 = vunpack.c.l.b16 %v303
    %v493 = vunpack.c.h.b16 %v303
    %v494 = vunpack.c.l.b16 %v304
    %v495 = vunpack.c.h.b16 %v304
    %v496 = vunpack.c.l.b16 %v305
    %v497 = vunpack.c.h.b16 %v305
    %v498 = vunpack.c.l.b16 %v306
    %v499 = vunpack.c.h.b16 %v306
    %v500 = vunpack.c.l.b16 %v307
    %v501 = vunpack.c.h.b16 %v307
    %v502 = vunpack.c.l.b16 %v308
    %v503 = vunpack.c.h.b16 %v308
    %v504 = vunpack.c.l.b16 %v309
    %v505 = vunpack.c.h.b16 %v309
    %v506 = vunpack.c.l.b16 %v310
    %v507 = vunpack.c.h.b16 %v310
    %v508 = vunpack.c.l.b16 %v311
    %v509 = vunpack.c.h.b16 %v311
    %v510 = vunpack.c.l.b16 %v312
    %v511 = vunpack.c.h.b16 %v312
    %v512 = vunpack.c.l.b16 %v313
    %v513 = vunpack.c.h.b16 %v313
    %v514 = vunpack.c.l.b16 %v314
    %v515 = vunpack.c.h.b16 %v314
    %v516 = vunpack.c.l.b16 %v315
    %v517 = vunpack.c.h.b16 %v315
    %v518 = vunpack.c.l.b16 %v316
    %v519 = vunpack.c.h.b16 %v316
    %v520 = vunpack.c.l.b16 %v317
    %v521 = vunpack.c.h.b16 %v317
    %v522 = vpack.c.b16 %v396, %v394
    %v523 = vpack.c.b16 %v397, %v395
    %v524 = vpack.c.b16 %v400, %v398
    %v525 = vpack.c.b16 %v401, %v399
    %v526 = vpack.c.b16 %v404, %v402
    %v527 = vpack.c.b16 %v405, %v403
    %v528 = vpack.c.b16 %v408, %v406
    %v529 = vpack.c.b16 %v409, %v407
    %v530 = vpack.c.b16 %v412, %v410
    %v531 = vpack.c.b16 %v413, %v411
    %v532 = vpack.c.b16 %v416, %v414
    %v533 = vpack.c.b16 %v417, %v415
    %v534 = vpack.c.b16 %v420, %v418
    %v535 = vpack.c.b16 %v421, %v419
    %v536 = vpack.c.b16 %v424, %v422
    %v537 = vpack.c.b16 %v425, %v423
    %v538 = vpack.c.b16 %v428, %v426
    %v539 = vpack.c.b16 %v429, %v427
    %v540 = vpack.c.b16 %v432, %v430
    %v541 = vpack.c.b16 %v433, %v431
    %v542 = vpack.c.b16 %v436, %v434
    %v543 = vpack.c.b16 %v437, %v435
    %v544 = vpack.c.b16 %v440, %v438
    %v545 = vpack.c.b16 %v441, %v439
    %v546 = vpack.c.b16 %v444, %v442
    %v547 = vpack.c.b16 %v445, %v443
    %v548 = vpack.c.b16 %v448, %v446
    %v549 = vpack.c.b16 %v449, %v447
    %v550 = vpack.c.b16 %v452, %v450
    %v551 = vpack.c.b16 %v453, %v451
    %v552 = vpack.c.b16 %v456, %v454
    %v553 = vpack.c.b16 %v457, %v455
    %v554 = vpack.c.b16 %v460, %v458
    %v555 = vpack.c.b16 %v461, %v459
    %v556 = vpack.c.b16 %v464, %v462
    %v557 = vpack.c.b16 %v465, %v463
    %v558 = vpack.c.b16 %v468, %v466
    %v559 = vpack.c.b16 %v469, %v467
    %v560 = vpack.c.b16 %v472, %v470
    %v561 = vpack.c.b16 %v473, %v471
    %v562 = vpack.c.b16 %v476, %v474
    %v563 = vpack.c.b16 %v477, %v475
    %v564 = vpack.c.b16 %v480, %v478
    %v565 = vpack.c.b16 %v481, %v479
    %v566 = vpack.c.b16 %v484, %v482
    %v567 = vpack.c.b16 %v485, %v483
    %v568 = vpack.c.b16 %v488, %v486
    %v569 = vpack.c.b16 %v489, %v487
    %v570 = vpack.c.b16 %v492, %v490
    %v571 = vpack.c.b16 %v493, %v491
    %v572 = vpack.c.b16 %v496, %v494
    %v573 = vpack.c.b16 %v497, %v495
    %v574 = vpack.c.b16 %v500, %v498
    %v575 = vpack.c.b16 %v501, %v499
    %v576 = vpack.c.b16 %v504, %v502
    %v577 = vpack.c.b16 %v505, %v503
    %v578 = vpack.c.b16 %v508, %v506
    %v579 = vpack.c.b16 %v509, %v507
    %v580 = vpack.c.b16 %v512, %v510
    %v581 = vpack.c.b16 %v513, %v511
    %v582 = vpack.c.b16 %v516, %v514
    %v583 = vpack.c.b16 %v517, %v515
    %v584 = vpack.c.b16 %v520, %v518
    %v585 = vpack.c.b16 %v521, %v519
    %650 = vmatprep.subr.bf16.mxu0 %v523
    %651 = vmatpush1.bf16.msra.mxu0 %v522
    %652 = vmatprep.subr.bf16.mxu0 %v525
    %653 = vmatpush1.bf16.msra.mxu0 %v524
    %654 = vmatprep.subr.bf16.mxu0 %v527
    %655 = vmatpush1.bf16.msra.mxu0 %v526
    %656 = vmatprep.subr.bf16.mxu0 %v529
    %657 = vmatpush1.bf16.msra.mxu0 %v528
    %658 = vmatprep.subr.bf16.mxu0 %v531
    %659 = vmatpush1.bf16.msra.mxu0 %v530
    %660 = vmatprep.subr.bf16.mxu0 %v533
    %661 = vmatpush1.bf16.msra.mxu0 %v532
    %662 = vmatprep.subr.bf16.mxu0 %v535
    %663 = vmatpush1.bf16.msra.mxu0 %v534
    %664 = vmatprep.subr.bf16.mxu0 %v537
    %665 = vmatpush1.bf16.msra.mxu0 %v536
    %666 = vmatprep.subr.bf16.mxu0 %v539
    %667 = vmatpush1.bf16.msra.mxu0 %v538
    %668 = vmatprep.subr.bf16.mxu0 %v541
    %669 = vmatpush1.bf16.msra.mxu0 %v540
    %670 = vmatprep.subr.bf16.mxu0 %v543
    %671 = vmatpush1.bf16.msra.mxu0 %v542
    %672 = vmatprep.subr.bf16.mxu0 %v545
    %673 = vmatpush1.bf16.msra.mxu0 %v544
    %674 = vmatprep.subr.bf16.mxu0 %v547
    %675 = vmatpush1.bf16.msra.mxu0 %v546
    %676 = vmatprep.subr.bf16.mxu0 %v549
    %677 = vmatpush1.bf16.msra.mxu0 %v548
    %678 = vmatprep.subr.bf16.mxu0 %v551
    %679 = vmatpush1.bf16.msra.mxu0 %v550
    %680 = vmatprep.subr.bf16.mxu0 %v553
    %681 = vmatpush1.bf16.msra.mxu0 %v552
    %682 = vmatprep.mubr.bf16.mxu0 %v191
    %683 = vmatmul.mubr.bf16.gmra.mrb[0].mxu0 %v190
    %v684 = vpop.f32.mrb[0].mxu0
    %v685 = vadd.f32 %v323, %v684
    %v686 = vpop.f32.mrb[0].mxu0
    %v687 = vadd.f32 %v327, %v686
    %v688 = vpop.f32.mrb[0].mxu0
    %v689 = vadd.f32 %v323, %v688
    %v690 = vpop.f32.mrb[0].mxu0
    %v691 = vadd.f32 %v327, %v690
    %692 = vmatprep.mubr.bf16.mxu0 %v195
    %693 = vmatmul.mubr.bf16.gmra.mrb[0].mxu0 %v194
    %v694 = vpop.f32.mrb[0].mxu0
    %v695 = vadd.f32 %v323, %v694
    %v696 = vpop.f32.mrb[0].mxu0
    %v697 = vadd.f32 %v327, %v696
    %v698 = vpop.f32.mrb[0].mxu0
    %v699 = vadd.f32 %v323, %v698
    %v700 = vpop.f32.mrb[0].mxu0
    %v701 = vadd.f32 %v327, %v700
    %702 = vmatprep.mubr.bf16.mxu0 %v199
    %703 = vmatmul.mubr.bf16.gmra.mrb[0].mxu0 %v198
    %v704 = vpop.f32.mrb[0].mxu0
    %v705 = vadd.f32 %v323, %v704
    %v706 = vpop.f32.mrb[0].mxu0
    %v707 = vadd.f32 %v327, %v706
    %v708 = vpop.f32.mrb[0].mxu0
    %v709 = vadd.f32 %v323, %v708
    %v710 = vpop.f32.mrb[0].mxu0
    %v711 = vadd.f32 %v327, %v710
    %712 = vmatprep.mubr.bf16.mxu0 %v203
    %713 = vmatmul.mubr.bf16.gmra.mrb[0].mxu0 %v202
    %v714 = vpop.f32.mrb[0].mxu0
    %v715 = vadd.f32 %v323, %v714
    %v716 = vpop.f32.mrb[0].mxu0
    %v717 = vadd.f32 %v327, %v716
    %v718 = vpop.f32.mrb[0].mxu0
    %v719 = vadd.f32 %v323, %v718
    %v720 = vpop.f32.mrb[0].mxu0
    %v721 = vadd.f32 %v327, %v720
    %722 = vmatprep.mubr.bf16.mxu0 %v207
    %723 = vmatmul.mubr.bf16.gmra.mrb[0].mxu0 %v206
    %v724 = vpop.f32.mrb[0].mxu0
    %v725 = vadd.f32 %v323, %v724
    %v726 = vpop.f32.mrb[0].mxu0
    %v727 = vadd.f32 %v327, %v726
    %v728 = vpop.f32.mrb[0].mxu0
    %v729 = vadd.f32 %v323, %v728
    %v730 = vpop.f32.mrb[0].mxu0
    %v731 = vadd.f32 %v327, %v730
    %732 = vmatprep.mubr.bf16.mxu0 %v211
    %733 = vmatmul.mubr.bf16.gmra.mrb[0].mxu0 %v210
    %v734 = vpop.f32.mrb[0].mxu0
    %v735 = vadd.f32 %v323, %v734
    %v736 = vpop.f32.mrb[0].mxu0
    %v737 = vadd.f32 %v327, %v736
    %v738 = vpop.f32.mrb[0].mxu0
    %v739 = vadd.f32 %v323, %v738
    %v740 = vpop.f32.mrb[0].mxu0
    %v741 = vadd.f32 %v327, %v740
    %742 = vmatprep.mubr.bf16.mxu0 %v215
    %743 = vmatmul.mubr.bf16.gmra.mrb[0].mxu0 %v214
    %v744 = vpop.f32.mrb[0].mxu0
    %v745 = vadd.f32 %v323, %v744
    %v746 = vpop.f32.mrb[0].mxu0
    %v747 = vadd.f32 %v327, %v746
    %v748 = vpop.f32.mrb[0].mxu0
    %v749 = vadd.f32 %v323, %v748
    %v750 = vpop.f32.mrb[0].mxu0
    %v751 = vadd.f32 %v327, %v750
    %752 = vmatprep.mubr.bf16.mxu0 %v219
    %753 = vmatmul.mubr.bf16.gmra.mrb[0].mxu0 %v218
    %v754 = vpop.f32.mrb[0].mxu0
    %v755 = vadd.f32 %v323, %v754
    %v756 = vpop.f32.mrb[0].mxu0
    %v757 = vadd.f32 %v327, %v756
    %v758 = vpop.f32.mrb[0].mxu0
    %v759 = vadd.f32 %v323, %v758
    %v760 = vpop.f32.mrb[0].mxu0
    %v761 = vadd.f32 %v327, %v760
    %762 = vmatprep.mubr.bf16.mxu0 %v223
    %763 = vmatmul.mubr.bf16.gmra.mrb[0].mxu0 %v222
    %v764 = vpop.f32.mrb[0].mxu0
    %v765 = vadd.f32 %v323, %v764
    %v766 = vpop.f32.mrb[0].mxu0
    %v767 = vadd.f32 %v327, %v766
    %v768 = vpop.f32.mrb[0].mxu0
    %v769 = vadd.f32 %v323, %v768
    %v770 = vpop.f32.mrb[0].mxu0
    %v771 = vadd.f32 %v327, %v770
    %772 = vmatprep.mubr.bf16.mxu0 %v227
    %773 = vmatmul.mubr.bf16.gmra.mrb[0].mxu0 %v226
    %v774 = vpop.f32.mrb[0].mxu0
    %v775 = vadd.f32 %v323, %v774
    %v776 = vpop.f32.mrb[0].mxu0
    %v777 = vadd.f32 %v327, %v776
    %v778 = vpop.f32.mrb[0].mxu0
    %v779 = vadd.f32 %v323, %v778
    %v780 = vpop.f32.mrb[0].mxu0
    %v781 = vadd.f32 %v327, %v780
    %782 = vmatprep.mubr.bf16.mxu0 %v231
    %783 = vmatmul.mubr.bf16.gmra.mrb[0].mxu0 %v230
    %v784 = vpop.f32.mrb[0].mxu0
    %v785 = vadd.f32 %v323, %v784
    %v786 = vpop.f32.mrb[0].mxu0
    %v787 = vadd.f32 %v327, %v786
    %v788 = vpop.f32.mrb[0].mxu0
    %v789 = vadd.f32 %v323, %v788
    %v790 = vpop.f32.mrb[0].mxu0
    %v791 = vadd.f32 %v327, %v790
    %792 = vmatprep.mubr.bf16.mxu0 %v235
    %793 = vmatmul.mubr.bf16.gmra.mrb[0].mxu0 %v234
    %v794 = vpop.f32.mrb[0].mxu0
    %v795 = vadd.f32 %v323, %v794
    %v796 = vpop.f32.mrb[0].mxu0
    %v797 = vadd.f32 %v327, %v796
    %v798 = vpop.f32.mrb[0].mxu0
    %v799 = vadd.f32 %v323, %v798
    %v800 = vpop.f32.mrb[0].mxu0
    %v801 = vadd.f32 %v327, %v800
    %802 = vmatprep.mubr.bf16.mxu0 %v239
    %803 = vmatmul.mubr.bf16.gmra.mrb[0].mxu0 %v238
    %v804 = vpop.f32.mrb[0].mxu0
    %v805 = vadd.f32 %v323, %v804
    %v806 = vpop.f32.mrb[0].mxu0
    %v807 = vadd.f32 %v327, %v806
    %v808 = vpop.f32.mrb[0].mxu0
    %v809 = vadd.f32 %v323, %v808
    %v810 = vpop.f32.mrb[0].mxu0
    %v811 = vadd.f32 %v327, %v810
    %812 = vmatprep.mubr.bf16.mxu0 %v243
    %813 = vmatmul.mubr.bf16.gmra.mrb[0].mxu0 %v242
    %v814 = vpop.f32.mrb[0].mxu0
    %v815 = vadd.f32 %v323, %v814
    %v816 = vpop.f32.mrb[0].mxu0
    %v817 = vadd.f32 %v327, %v816
    %v818 = vpop.f32.mrb[0].mxu0
    %v819 = vadd.f32 %v323, %v818
    %v820 = vpop.f32.mrb[0].mxu0
    %v821 = vadd.f32 %v327, %v820
    %822 = vmatprep.mubr.bf16.mxu0 %v247
    %823 = vmatmul.mubr.bf16.gmra.mrb[0].mxu0 %v246
    %v824 = vpop.f32.mrb[0].mxu0
    %v825 = vadd.f32 %v323, %v824
    %v826 = vpop.f32.mrb[0].mxu0
    %v827 = vadd.f32 %v327, %v826
    %v828 = vpop.f32.mrb[0].mxu0
    %v829 = vadd.f32 %v323, %v828
    %v830 = vpop.f32.mrb[0].mxu0
    %v831 = vadd.f32 %v327, %v830
    %832 = vmatprep.mubr.bf16.mxu0 %v251
    %833 = vmatmul.mubr.bf16.gmra.mrb[0].mxu0 %v250
    %v834 = vpop.f32.mrb[0].mxu0
    %v835 = vadd.f32 %v323, %v834
    %v836 = vpop.f32.mrb[0].mxu0
    %v837 = vadd.f32 %v327, %v836
    %v838 = vpop.f32.mrb[0].mxu0
    %v839 = vadd.f32 %v323, %v838
    %v840 = vpop.f32.mrb[0].mxu0
    %v841 = vadd.f32 %v327, %v840
    %842 = vdwg.mxu0
    %843 = vmatprep.subr.bf16.mxu0 %v555
    %844 = vmatpush1.bf16.msra.mxu0 %v554
    %845 = vmatprep.subr.bf16.mxu0 %v557
    %846 = vmatpush1.bf16.msra.mxu0 %v556
    %847 = vmatprep.subr.bf16.mxu0 %v559
    %848 = vmatpush1.bf16.msra.mxu0 %v558
    %849 = vmatprep.subr.bf16.mxu0 %v561
    %850 = vmatpush1.bf16.msra.mxu0 %v560
    %851 = vmatprep.subr.bf16.mxu0 %v563
    %852 = vmatpush1.bf16.msra.mxu0 %v562
    %853 = vmatprep.subr.bf16.mxu0 %v565
    %854 = vmatpush1.bf16.msra.mxu0 %v564
    %855 = vmatprep.subr.bf16.mxu0 %v567
    %856 = vmatpush1.bf16.msra.mxu0 %v566
    %857 = vmatprep.subr.bf16.mxu0 %v569
    %858 = vmatpush1.bf16.msra.mxu0 %v568
    %859 = vmatprep.subr.bf16.mxu0 %v571
    %860 = vmatpush1.bf16.msra.mxu0 %v570
    %861 = vmatprep.subr.bf16.mxu0 %v573
    %862 = vmatpush1.bf16.msra.mxu0 %v572
    %863 = vmatprep.subr.bf16.mxu0 %v575
    %864 = vmatpush1.bf16.msra.mxu0 %v574
    %865 = vmatprep.subr.bf16.mxu0 %v577
    %866 = vmatpush1.bf16.msra.mxu0 %v576
    %867 = vmatprep.subr.bf16.mxu0 %v579
    %868 = vmatpush1.bf16.msra.mxu0 %v578
    %869 = vmatprep.subr.bf16.mxu0 %v581
    %870 = vmatpush1.bf16.msra.mxu0 %v580
    %871 = vmatprep.subr.bf16.mxu0 %v583
    %872 = vmatpush1.bf16.msra.mxu0 %v582
    %873 = vmatprep.subr.bf16.mxu0 %v585
    %874 = vmatpush1.bf16.msra.mxu0 %v584
    %875 = vmatprep.mubr.bf16.mxu0 %v193
    %876 = vmatmul.mubr.bf16.gmra.mrb[0].mxu0 %v192
    %v877 = vpop.f32.mrb[0].mxu0
    %v878 = vadd.f32 %v685, %v877
    %v879 = vpop.f32.mrb[0].mxu0
    %v880 = vadd.f32 %v687, %v879
    %v881 = vpop.f32.mrb[0].mxu0
    %v882 = vadd.f32 %v689, %v881
    %v883 = vpop.f32.mrb[0].mxu0
    %v884 = vadd.f32 %v691, %v883
    %885 = vmatprep.mubr.bf16.mxu0 %v197
    %886 = vmatmul.mubr.bf16.gmra.mrb[0].mxu0 %v196
    %v887 = vpop.f32.mrb[0].mxu0
    %v888 = vadd.f32 %v695, %v887
    %v889 = vpop.f32.mrb[0].mxu0
    %v890 = vadd.f32 %v697, %v889
    %v891 = vpop.f32.mrb[0].mxu0
    %v892 = vadd.f32 %v699, %v891
    %v893 = vpop.f32.mrb[0].mxu0
    %v894 = vadd.f32 %v701, %v893
    %895 = vmatprep.mubr.bf16.mxu0 %v201
    %896 = vmatmul.mubr.bf16.gmra.mrb[0].mxu0 %v200
    %v897 = vpop.f32.mrb[0].mxu0
    %v898 = vadd.f32 %v705, %v897
    %v899 = vpop.f32.mrb[0].mxu0
    %v900 = vadd.f32 %v707, %v899
    %v901 = vpop.f32.mrb[0].mxu0
    %v902 = vadd.f32 %v709, %v901
    %v903 = vpop.f32.mrb[0].mxu0
    %v904 = vadd.f32 %v711, %v903
    %905 = vmatprep.mubr.bf16.mxu0 %v205
    %906 = vmatmul.mubr.bf16.gmra.mrb[0].mxu0 %v204
    %v907 = vpop.f32.mrb[0].mxu0
    %v908 = vadd.f32 %v715, %v907
    %v909 = vpop.f32.mrb[0].mxu0
    %v910 = vadd.f32 %v717, %v909
    %v911 = vpop.f32.mrb[0].mxu0
    %v912 = vadd.f32 %v719, %v911
    %v913 = vpop.f32.mrb[0].mxu0
    %v914 = vadd.f32 %v721, %v913
    %915 = vmatprep.mubr.bf16.mxu0 %v209
    %916 = vmatmul.mubr.bf16.gmra.mrb[0].mxu0 %v208
    %v917 = vpop.f32.mrb[0].mxu0
    %v918 = vadd.f32 %v725, %v917
    %v919 = vpop.f32.mrb[0].mxu0
    %v920 = vadd.f32 %v727, %v919
    %v921 = vpop.f32.mrb[0].mxu0
    %v922 = vadd.f32 %v729, %v921
    %v923 = vpop.f32.mrb[0].mxu0
    %v924 = vadd.f32 %v731, %v923
    %925 = vmatprep.mubr.bf16.mxu0 %v213
    %926 = vmatmul.mubr.bf16.gmra.mrb[0].mxu0 %v212
    %v927 = vpop.f32.mrb[0].mxu0
    %v928 = vadd.f32 %v735, %v927
    %v929 = vpop.f32.mrb[0].mxu0
    %v930 = vadd.f32 %v737, %v929
    %v931 = vpop.f32.mrb[0].mxu0
    %v932 = vadd.f32 %v739, %v931
    %v933 = vpop.f32.mrb[0].mxu0
    %v934 = vadd.f32 %v741, %v933
    %935 = vmatprep.mubr.bf16.mxu0 %v217
    %936 = vmatmul.mubr.bf16.gmra.mrb[0].mxu0 %v216
    %v937 = vpop.f32.mrb[0].mxu0
    %v938 = vadd.f32 %v745, %v937
    %v939 = vpop.f32.mrb[0].mxu0
    %v940 = vadd.f32 %v747, %v939
    %v941 = vpop.f32.mrb[0].mxu0
    %v942 = vadd.f32 %v749, %v941
    %v943 = vpop.f32.mrb[0].mxu0
    %v944 = vadd.f32 %v751, %v943
    %945 = vmatprep.mubr.bf16.mxu0 %v221
    %946 = vmatmul.mubr.bf16.gmra.mrb[0].mxu0 %v220
    %v947 = vpop.f32.mrb[0].mxu0
    %v948 = vadd.f32 %v755, %v947
    %v949 = vpop.f32.mrb[0].mxu0
    %v950 = vadd.f32 %v757, %v949
    %v951 = vpop.f32.mrb[0].mxu0
    %v952 = vadd.f32 %v759, %v951
    %v953 = vpop.f32.mrb[0].mxu0
    %v954 = vadd.f32 %v761, %v953
    %955 = vmatprep.mubr.bf16.mxu0 %v225
    %956 = vmatmul.mubr.bf16.gmra.mrb[0].mxu0 %v224
    %v957 = vpop.f32.mrb[0].mxu0
    %v958 = vadd.f32 %v765, %v957
    %v959 = vpop.f32.mrb[0].mxu0
    %v960 = vadd.f32 %v767, %v959
    %v961 = vpop.f32.mrb[0].mxu0
    %v962 = vadd.f32 %v769, %v961
    %v963 = vpop.f32.mrb[0].mxu0
    %v964 = vadd.f32 %v771, %v963
    %965 = vmatprep.mubr.bf16.mxu0 %v229
    %966 = vmatmul.mubr.bf16.gmra.mrb[0].mxu0 %v228
    %v967 = vpop.f32.mrb[0].mxu0
    %v968 = vadd.f32 %v775, %v967
    %v969 = vpop.f32.mrb[0].mxu0
    %v970 = vadd.f32 %v777, %v969
    %v971 = vpop.f32.mrb[0].mxu0
    %v972 = vadd.f32 %v779, %v971
    %v973 = vpop.f32.mrb[0].mxu0
    %v974 = vadd.f32 %v781, %v973
    %975 = vmatprep.mubr.bf16.mxu0 %v233
    %976 = vmatmul.mubr.bf16.gmra.mrb[0].mxu0 %v232
    %v977 = vpop.f32.mrb[0].mxu0
    %v978 = vadd.f32 %v785, %v977
    %v979 = vpop.f32.mrb[0].mxu0
    %v980 = vadd.f32 %v787, %v979
    %v981 = vpop.f32.mrb[0].mxu0
    %v982 = vadd.f32 %v789, %v981
    %v983 = vpop.f32.mrb[0].mxu0
    %v984 = vadd.f32 %v791, %v983
    %985 = vmatprep.mubr.bf16.mxu0 %v237
    %986 = vmatmul.mubr.bf16.gmra.mrb[0].mxu0 %v236
    %v987 = vpop.f32.mrb[0].mxu0
    %v988 = vadd.f32 %v795, %v987
    %v989 = vpop.f32.mrb[0].mxu0
    %v990 = vadd.f32 %v797, %v989
    %v991 = vpop.f32.mrb[0].mxu0
    %v992 = vadd.f32 %v799, %v991
    %v993 = vpop.f32.mrb[0].mxu0
    %v994 = vadd.f32 %v801, %v993
    %995 = vmatprep.mubr.bf16.mxu0 %v241
    %996 = vmatmul.mubr.bf16.gmra.mrb[0].mxu0 %v240
    %v997 = vpop.f32.mrb[0].mxu0
    %v998 = vadd.f32 %v805, %v997
    %v999 = vpop.f32.mrb[0].mxu0
    %v1000 = vadd.f32 %v807, %v999
    %v1001 = vpop.f32.mrb[0].mxu0
    %v1002 = vadd.f32 %v809, %v1001
    %v1003 = vpop.f32.mrb[0].mxu0
    %v1004 = vadd.f32 %v811, %v1003
    %1005 = vmatprep.mubr.bf16.mxu0 %v245
    %1006 = vmatmul.mubr.bf16.gmra.mrb[0].mxu0 %v244
    %v1007 = vpop.f32.mrb[0].mxu0
    %v1008 = vadd.f32 %v815, %v1007
    %v1009 = vpop.f32.mrb[0].mxu0
    %v1010 = vadd.f32 %v817, %v1009
    %v1011 = vpop.f32.mrb[0].mxu0
    %v1012 = vadd.f32 %v819, %v1011
    %v1013 = vpop.f32.mrb[0].mxu0
    %v1014 = vadd.f32 %v821, %v1013
    %1015 = vmatprep.mubr.bf16.mxu0 %v249
    %1016 = vmatmul.mubr.bf16.gmra.mrb[0].mxu0 %v248
    %v1017 = vpop.f32.mrb[0].mxu0
    %v1018 = vadd.f32 %v825, %v1017
    %v1019 = vpop.f32.mrb[0].mxu0
    %v1020 = vadd.f32 %v827, %v1019
    %v1021 = vpop.f32.mrb[0].mxu0
    %v1022 = vadd.f32 %v829, %v1021
    %v1023 = vpop.f32.mrb[0].mxu0
    %v1024 = vadd.f32 %v831, %v1023
    %1025 = vmatprep.mubr.bf16.mxu0 %v253
    %1026 = vmatmul.mubr.bf16.gmra.mrb[0].mxu0 %v252
    %v1027 = vpop.f32.mrb[0].mxu0
    %v1028 = vadd.f32 %v835, %v1027
    %v1029 = vpop.f32.mrb[0].mxu0
    %v1030 = vadd.f32 %v837, %v1029
    %v1031 = vpop.f32.mrb[0].mxu0
    %v1032 = vadd.f32 %v839, %v1031
    %v1033 = vpop.f32.mrb[0].mxu0
    %v1034 = vadd.f32 %v841, %v1033
    %1035 = vdwg.mxu0
    %v1036 = vmax.f32 %v878, 0.0
    %v1037 = vmax.f32 %v880, 0.0
    %v1038 = vmax.f32 %v882, 0.0
    %v1039 = vmax.f32 %v884, 0.0
    %v1040 = vmax.f32 %v888, 0.0
    %v1041 = vmax.f32 %v890, 0.0
    %v1042 = vmax.f32 %v892, 0.0
    %v1043 = vmax.f32 %v894, 0.0
    %v1044 = vmax.f32 %v898, 0.0
    %v1045 = vmax.f32 %v900, 0.0
    %v1046 = vmax.f32 %v902, 0.0
    %v1047 = vmax.f32 %v904, 0.0
    %v1048 = vmax.f32 %v908, 0.0
    %v1049 = vmax.f32 %v910, 0.0
    %v1050 = vmax.f32 %v912, 0.0
    %v1051 = vmax.f32 %v914, 0.0
    %v1052 = vmax.f32 %v918, 0.0
    %v1053 = vmax.f32 %v920, 0.0
    %v1054 = vmax.f32 %v922, 0.0
    %v1055 = vmax.f32 %v924, 0.0
    %v1056 = vmax.f32 %v928, 0.0
    %v1057 = vmax.f32 %v930, 0.0
    %v1058 = vmax.f32 %v932, 0.0
    %v1059 = vmax.f32 %v934, 0.0
    %v1060 = vmax.f32 %v938, 0.0
    %v1061 = vmax.f32 %v940, 0.0
    %v1062 = vmax.f32 %v942, 0.0
    %v1063 = vmax.f32 %v944, 0.0
    %v1064 = vmax.f32 %v948, 0.0
    %v1065 = vmax.f32 %v950, 0.0
    %v1066 = vmax.f32 %v952, 0.0
    %v1067 = vmax.f32 %v954, 0.0
    %v1068 = vmax.f32 %v958, 0.0
    %v1069 = vmax.f32 %v960, 0.0
    %v1070 = vmax.f32 %v962, 0.0
    %v1071 = vmax.f32 %v964, 0.0
    %v1072 = vmax.f32 %v968, 0.0
    %v1073 = vmax.f32 %v970, 0.0
    %v1074 = vmax.f32 %v972, 0.0
    %v1075 = vmax.f32 %v974, 0.0
    %v1076 = vmax.f32 %v978, 0.0
    %v1077 = vmax.f32 %v980, 0.0
    %v1078 = vmax.f32 %v982, 0.0
    %v1079 = vmax.f32 %v984, 0.0
    %v1080 = vmax.f32 %v988, 0.0
    %v1081 = vmax.f32 %v990, 0.0
    %v1082 = vmax.f32 %v992, 0.0
    %v1083 = vmax.f32 %v994, 0.0
    %v1084 = vmax.f32 %v998, 0.0
    %v1085 = vmax.f32 %v1000, 0.0
    %v1086 = vmax.f32 %v1002, 0.0
    %v1087 = vmax.f32 %v1004, 0.0
    %v1088 = vmax.f32 %v1008, 0.0
    %v1089 = vmax.f32 %v1010, 0.0
    %v1090 = vmax.f32 %v1012, 0.0
    %v1091 = vmax.f32 %v1014, 0.0
    %v1092 = vmax.f32 %v1018, 0.0
    %v1093 = vmax.f32 %v1020, 0.0
    %v1094 = vmax.f32 %v1022, 0.0
    %v1095 = vmax.f32 %v1024, 0.0
    %v1096 = vmax.f32 %v1028, 0.0
    %v1097 = vmax.f32 %v1030, 0.0
    %v1098 = vmax.f32 %v1032, 0.0
    %v1099 = vmax.f32 %v1034, 0.0
    %v1100 = vpack.c.bf16 %v1038, %v1036
    %v1101 = vpack.c.bf16 %v1039, %v1037
    %v1102 = vpack.c.bf16 %v1042, %v1040
    %v1103 = vpack.c.bf16 %v1043, %v1041
    %v1104 = vpack.c.bf16 %v1046, %v1044
    %v1105 = vpack.c.bf16 %v1047, %v1045
    %v1106 = vpack.c.bf16 %v1050, %v1048
    %v1107 = vpack.c.bf16 %v1051, %v1049
    %v1108 = vpack.c.bf16 %v1054, %v1052
    %v1109 = vpack.c.bf16 %v1055, %v1053
    %v1110 = vpack.c.bf16 %v1058, %v1056
    %v1111 = vpack.c.bf16 %v1059, %v1057
    %v1112 = vpack.c.bf16 %v1062, %v1060
    %v1113 = vpack.c.bf16 %v1063, %v1061
    %v1114 = vpack.c.bf16 %v1066, %v1064
    %v1115 = vpack.c.bf16 %v1067, %v1065
    %v1116 = vpack.c.bf16 %v1070, %v1068
    %v1117 = vpack.c.bf16 %v1071, %v1069
    %v1118 = vpack.c.bf16 %v1074, %v1072
    %v1119 = vpack.c.bf16 %v1075, %v1073
    %v1120 = vpack.c.bf16 %v1078, %v1076
    %v1121 = vpack.c.bf16 %v1079, %v1077
    %v1122 = vpack.c.bf16 %v1082, %v1080
    %v1123 = vpack.c.bf16 %v1083, %v1081
    %v1124 = vpack.c.bf16 %v1086, %v1084
    %v1125 = vpack.c.bf16 %v1087, %v1085
    %v1126 = vpack.c.bf16 %v1090, %v1088
    %v1127 = vpack.c.bf16 %v1091, %v1089
    %v1128 = vpack.c.bf16 %v1094, %v1092
    %v1129 = vpack.c.bf16 %v1095, %v1093
    %v1130 = vpack.c.bf16 %v1098, %v1096
    %v1131 = vpack.c.bf16 %v1099, %v1097
    %v1132 = vld [vmem:[#allocation6] sm:$0xf]
    %v1133 = vld [vmem:[#allocation6 + $0x4] sm:$0xf]
    %v1134 = vld [vmem:[#allocation6 + $0x8] sm:$0xf]
    %v1135 = vld [vmem:[#allocation6 + $0xc] sm:$0xf]
    %v1136 = vld [vmem:[#allocation6 + $0x10] sm:$0xf]
    %v1137 = vld [vmem:[#allocation6 + $0x14] sm:$0xf]
    %v1138 = vld [vmem:[#allocation6 + $0x18] sm:$0xf]
    %v1139 = vld [vmem:[#allocation6 + $0x1c] sm:$0xf]
    %v1140 = vld [vmem:[#allocation6 + $0x20] sm:$0xf]
    %v1141 = vld [vmem:[#allocation6 + $0x24] sm:$0xf]
    %v1142 = vld [vmem:[#allocation6 + $0x28] sm:$0xf]
    %v1143 = vld [vmem:[#allocation6 + $0x2c] sm:$0xf]
    %v1144 = vld [vmem:[#allocation6 + $0x30] sm:$0xf]
    %v1145 = vld [vmem:[#allocation6 + $0x34] sm:$0xf]
    %v1146 = vld [vmem:[#allocation6 + $0x38] sm:$0xf]
    %v1147 = vld [vmem:[#allocation6 + $0x3c] sm:$0xf]
    %v1148 = vld [vmem:[#allocation6 + $0x40] sm:$0xf]
    %v1149 = vld [vmem:[#allocation6 + $0x44] sm:$0xf]
    %v1150 = vld [vmem:[#allocation6 + $0x48] sm:$0xf]
    %v1151 = vld [vmem:[#allocation6 + $0x4c] sm:$0xf]
    %v1152 = vld [vmem:[#allocation6 + $0x50] sm:$0xf]
    %v1153 = vld [vmem:[#allocation6 + $0x54] sm:$0xf]
    %v1154 = vld [vmem:[#allocation6 + $0x58] sm:$0xf]
    %v1155 = vld [vmem:[#allocation6 + $0x5c] sm:$0xf]
    %v1156 = vld [vmem:[#allocation6 + $0x60] sm:$0xf]
    %v1157 = vld [vmem:[#allocation6 + $0x64] sm:$0xf]
    %v1158 = vld [vmem:[#allocation6 + $0x68] sm:$0xf]
    %v1159 = vld [vmem:[#allocation6 + $0x6c] sm:$0xf]
    %v1160 = vld [vmem:[#allocation6 + $0x70] sm:$0xf]
    %v1161 = vld [vmem:[#allocation6 + $0x74] sm:$0xf]
    %v1162 = vld [vmem:[#allocation6 + $0x78] sm:$0xf]
    %v1163 = vld [vmem:[#allocation6 + $0x7c] sm:$0xf]
    %v1164 = vld [vmem:[%s4] sm:$0x1]
    %v1166 = vlaneseq
    %v1167 = vshrl.u32 %v1166, 7
    %v1168 = vsub.s32 0, %v1167
    %v1169 = vrot.slane %v1164, %v1168
    %v1203 = vunpack.c.l.b16 %v1132
    %v1204 = vunpack.c.l.b16 %v1133
    %v1205 = vunpack.c.l.b16 %v1134
    %v1206 = vunpack.c.l.b16 %v1135
    %v1207 = vunpack.c.l.b16 %v1136
    %v1208 = vunpack.c.l.b16 %v1137
    %v1209 = vunpack.c.l.b16 %v1138
    %v1210 = vunpack.c.l.b16 %v1139
    %v1211 = vunpack.c.l.b16 %v1140
    %v1212 = vunpack.c.l.b16 %v1141
    %v1213 = vunpack.c.l.b16 %v1142
    %v1214 = vunpack.c.l.b16 %v1143
    %v1215 = vunpack.c.l.b16 %v1144
    %v1216 = vunpack.c.l.b16 %v1145
    %v1217 = vunpack.c.l.b16 %v1146
    %v1218 = vunpack.c.l.b16 %v1147
    %v1219 = vunpack.c.l.b16 %v1148
    %v1220 = vunpack.c.l.b16 %v1149
    %v1221 = vunpack.c.l.b16 %v1150
    %v1222 = vunpack.c.l.b16 %v1151
    %v1223 = vunpack.c.l.b16 %v1152
    %v1224 = vunpack.c.l.b16 %v1153
    %v1225 = vunpack.c.l.b16 %v1154
    %v1226 = vunpack.c.l.b16 %v1155
    %v1227 = vunpack.c.l.b16 %v1156
    %v1228 = vunpack.c.l.b16 %v1157
    %v1229 = vunpack.c.l.b16 %v1158
    %v1230 = vunpack.c.l.b16 %v1159
    %v1231 = vunpack.c.l.b16 %v1160
    %v1232 = vunpack.c.l.b16 %v1161
    %v1233 = vunpack.c.l.b16 %v1162
    %v1234 = vunpack.c.l.b16 %v1163
    %v1235 = vpack.c.b16 %v1204, %v1203
    %v1236 = vpack.c.b16 %v1206, %v1205
    %v1237 = vpack.c.b16 %v1208, %v1207
    %v1238 = vpack.c.b16 %v1210, %v1209
    %v1239 = vpack.c.b16 %v1212, %v1211
    %v1240 = vpack.c.b16 %v1214, %v1213
    %v1241 = vpack.c.b16 %v1216, %v1215
    %v1242 = vpack.c.b16 %v1218, %v1217
    %v1243 = vpack.c.b16 %v1220, %v1219
    %v1244 = vpack.c.b16 %v1222, %v1221
    %v1245 = vpack.c.b16 %v1224, %v1223
    %v1246 = vpack.c.b16 %v1226, %v1225
    %v1247 = vpack.c.b16 %v1228, %v1227
    %v1248 = vpack.c.b16 %v1230, %v1229
    %v1249 = vpack.c.b16 %v1232, %v1231
    %v1250 = vpack.c.b16 %v1234, %v1233
    %1267 = vmatprep.subr.bf16.mxu0 0
    %1268 = vmatpush1.bf16.msra.mxu0 %v1235
    %1269 = vmatprep.subr.bf16.mxu0 0
    %1270 = vmatpush1.bf16.msra.mxu0 %v1236
    %1271 = vmatprep.subr.bf16.mxu0 0
    %1272 = vmatpush1.bf16.msra.mxu0 %v1237
    %1273 = vmatprep.subr.bf16.mxu0 0
    %1274 = vmatpush1.bf16.msra.mxu0 %v1238
    %1275 = vmatprep.subr.bf16.mxu0 0
    %1276 = vmatpush1.bf16.msra.mxu0 %v1239
    %1277 = vmatprep.subr.bf16.mxu0 0
    %1278 = vmatpush1.bf16.msra.mxu0 %v1240
    %1279 = vmatprep.subr.bf16.mxu0 0
    %1280 = vmatpush1.bf16.msra.mxu0 %v1241
    %1281 = vmatprep.subr.bf16.mxu0 0
    %1282 = vmatpush1.bf16.msra.mxu0 %v1242
    %1283 = vmatprep.subr.bf16.mxu0 0
    %1284 = vmatpush1.bf16.msra.mxu0 %v1243
    %1285 = vmatprep.subr.bf16.mxu0 0
    %1286 = vmatpush1.bf16.msra.mxu0 %v1244
    %1287 = vmatprep.subr.bf16.mxu0 0
    %1288 = vmatpush1.bf16.msra.mxu0 %v1245
    %1289 = vmatprep.subr.bf16.mxu0 0
    %1290 = vmatpush1.bf16.msra.mxu0 %v1246
    %1291 = vmatprep.subr.bf16.mxu0 0
    %1292 = vmatpush1.bf16.msra.mxu0 %v1247
    %1293 = vmatprep.subr.bf16.mxu0 0
    %1294 = vmatpush1.bf16.msra.mxu0 %v1248
    %1295 = vmatprep.subr.bf16.mxu0 0
    %1296 = vmatpush1.bf16.msra.mxu0 %v1249
    %1297 = vmatprep.subr.bf16.mxu0 0
    %1298 = vmatpush1.bf16.msra.mxu0 %v1250
    %1299 = vmatprep.mubr.bf16.mxu0 %v1101
    %1300 = vmatmul.mubr.bf16.gmra.mrb[0].mxu0 %v1100
    %v1301 = vpop.f32.mrb[0].mxu0
    %v1302 = vadd.f32 %v1169, %v1301
    %v1303 = vpop.f32.mrb[0].mxu0
    %v1304 = vpop.f32.mrb[0].mxu0
    %v1305 = vadd.f32 %v1169, %v1304
    %v1306 = vpop.f32.mrb[0].mxu0
    %1307 = vmatprep.mubr.bf16.mxu0 %v1103
    %1308 = vmatmul.mubr.bf16.gmra.mrb[0].mxu0 %v1102
    %v1309 = vpop.f32.mrb[0].mxu0
    %v1310 = vadd.f32 %v1169, %v1309
    %v1311 = vpop.f32.mrb[0].mxu0
    %v1312 = vpop.f32.mrb[0].mxu0
    %v1313 = vadd.f32 %v1169, %v1312
    %v1314 = vpop.f32.mrb[0].mxu0
    %1315 = vmatprep.mubr.bf16.mxu0 %v1105
    %1316 = vmatmul.mubr.bf16.gmra.mrb[0].mxu0 %v1104
    %v1317 = vpop.f32.mrb[0].mxu0
    %v1318 = vadd.f32 %v1169, %v1317
    %v1319 = vpop.f32.mrb[0].mxu0
    %v1320 = vpop.f32.mrb[0].mxu0
    %v1321 = vadd.f32 %v1169, %v1320
    %v1322 = vpop.f32.mrb[0].mxu0
    %1323 = vmatprep.mubr.bf16.mxu0 %v1107
    %1324 = vmatmul.mubr.bf16.gmra.mrb[0].mxu0 %v1106
    %v1325 = vpop.f32.mrb[0].mxu0
    %v1326 = vadd.f32 %v1169, %v1325
    %v1327 = vpop.f32.mrb[0].mxu0
    %v1328 = vpop.f32.mrb[0].mxu0
    %v1329 = vadd.f32 %v1169, %v1328
    %v1330 = vpop.f32.mrb[0].mxu0
    %1331 = vmatprep.mubr.bf16.mxu0 %v1109
    %1332 = vmatmul.mubr.bf16.gmra.mrb[0].mxu0 %v1108
    %v1333 = vpop.f32.mrb[0].mxu0
    %v1334 = vadd.f32 %v1169, %v1333
    %v1335 = vpop.f32.mrb[0].mxu0
    %v1336 = vpop.f32.mrb[0].mxu0
    %v1337 = vadd.f32 %v1169, %v1336
    %v1338 = vpop.f32.mrb[0].mxu0
    %1339 = vmatprep.mubr.bf16.mxu0 %v1111
    %1340 = vmatmul.mubr.bf16.gmra.mrb[0].mxu0 %v1110
    %v1341 = vpop.f32.mrb[0].mxu0
    %v1342 = vadd.f32 %v1169, %v1341
    %v1343 = vpop.f32.mrb[0].mxu0
    %v1344 = vpop.f32.mrb[0].mxu0
    %v1345 = vadd.f32 %v1169, %v1344
    %v1346 = vpop.f32.mrb[0].mxu0
    %1347 = vmatprep.mubr.bf16.mxu0 %v1113
    %1348 = vmatmul.mubr.bf16.gmra.mrb[0].mxu0 %v1112
    %v1349 = vpop.f32.mrb[0].mxu0
    %v1350 = vadd.f32 %v1169, %v1349
    %v1351 = vpop.f32.mrb[0].mxu0
    %v1352 = vpop.f32.mrb[0].mxu0
    %v1353 = vadd.f32 %v1169, %v1352
    %v1354 = vpop.f32.mrb[0].mxu0
    %1355 = vmatprep.mubr.bf16.mxu0 %v1115
    %1356 = vmatmul.mubr.bf16.gmra.mrb[0].mxu0 %v1114
    %v1357 = vpop.f32.mrb[0].mxu0
    %v1358 = vadd.f32 %v1169, %v1357
    %v1359 = vpop.f32.mrb[0].mxu0
    %v1360 = vpop.f32.mrb[0].mxu0
    %v1361 = vadd.f32 %v1169, %v1360
    %v1362 = vpop.f32.mrb[0].mxu0
    %1363 = vmatprep.mubr.bf16.mxu0 %v1117
    %1364 = vmatmul.mubr.bf16.gmra.mrb[0].mxu0 %v1116
    %v1365 = vpop.f32.mrb[0].mxu0
    %v1366 = vadd.f32 %v1169, %v1365
    %v1367 = vpop.f32.mrb[0].mxu0
    %v1368 = vpop.f32.mrb[0].mxu0
    %v1369 = vadd.f32 %v1169, %v1368
    %v1370 = vpop.f32.mrb[0].mxu0
    %1371 = vmatprep.mubr.bf16.mxu0 %v1119
    %1372 = vmatmul.mubr.bf16.gmra.mrb[0].mxu0 %v1118
    %v1373 = vpop.f32.mrb[0].mxu0
    %v1374 = vadd.f32 %v1169, %v1373
    %v1375 = vpop.f32.mrb[0].mxu0
    %v1376 = vpop.f32.mrb[0].mxu0
    %v1377 = vadd.f32 %v1169, %v1376
    %v1378 = vpop.f32.mrb[0].mxu0
    %1379 = vmatprep.mubr.bf16.mxu0 %v1121
    %1380 = vmatmul.mubr.bf16.gmra.mrb[0].mxu0 %v1120
    %v1381 = vpop.f32.mrb[0].mxu0
    %v1382 = vadd.f32 %v1169, %v1381
    %v1383 = vpop.f32.mrb[0].mxu0
    %v1384 = vpop.f32.mrb[0].mxu0
    %v1385 = vadd.f32 %v1169, %v1384
    %v1386 = vpop.f32.mrb[0].mxu0
    %1387 = vmatprep.mubr.bf16.mxu0 %v1123
    %1388 = vmatmul.mubr.bf16.gmra.mrb[0].mxu0 %v1122
    %v1389 = vpop.f32.mrb[0].mxu0
    %v1390 = vadd.f32 %v1169, %v1389
    %v1391 = vpop.f32.mrb[0].mxu0
    %v1392 = vpop.f32.mrb[0].mxu0
    %v1393 = vadd.f32 %v1169, %v1392
    %v1394 = vpop.f32.mrb[0].mxu0
    %1395 = vmatprep.mubr.bf16.mxu0 %v1125
    %1396 = vmatmul.mubr.bf16.gmra.mrb[0].mxu0 %v1124
    %v1397 = vpop.f32.mrb[0].mxu0
    %v1398 = vadd.f32 %v1169, %v1397
    %v1399 = vpop.f32.mrb[0].mxu0
    %v1400 = vpop.f32.mrb[0].mxu0
    %v1401 = vadd.f32 %v1169, %v1400
    %v1402 = vpop.f32.mrb[0].mxu0
    %1403 = vmatprep.mubr.bf16.mxu0 %v1127
    %1404 = vmatmul.mubr.bf16.gmra.mrb[0].mxu0 %v1126
    %v1405 = vpop.f32.mrb[0].mxu0
    %v1406 = vadd.f32 %v1169, %v1405
    %v1407 = vpop.f32.mrb[0].mxu0
    %v1408 = vpop.f32.mrb[0].mxu0
    %v1409 = vadd.f32 %v1169, %v1408
    %v1410 = vpop.f32.mrb[0].mxu0
    %1411 = vmatprep.mubr.bf16.mxu0 %v1129
    %1412 = vmatmul.mubr.bf16.gmra.mrb[0].mxu0 %v1128
    %v1413 = vpop.f32.mrb[0].mxu0
    %v1414 = vadd.f32 %v1169, %v1413
    %v1415 = vpop.f32.mrb[0].mxu0
    %v1416 = vpop.f32.mrb[0].mxu0
    %v1417 = vadd.f32 %v1169, %v1416
    %v1418 = vpop.f32.mrb[0].mxu0
    %1419 = vmatprep.mubr.bf16.mxu0 %v1131
    %1420 = vmatmul.mubr.bf16.gmra.mrb[0].mxu0 %v1130
    %v1421 = vpop.f32.mrb[0].mxu0
    %v1422 = vadd.f32 %v1169, %v1421
    %v1423 = vpop.f32.mrb[0].mxu0
    %v1424 = vpop.f32.mrb[0].mxu0
    %v1425 = vadd.f32 %v1169, %v1424
    %v1426 = vpop.f32.mrb[0].mxu0
    %1427 = vdwg.mxu0
    %1428 = vst [vmem:[%s5] sm:$0xff] %v1302
    %1429 = vst [vmem:[%s5 + $0x8] sm:$0xff] %v1305
    %1430 = vst [vmem:[%s5 + $0x10] sm:$0xff] %v1310
    %1431 = vst [vmem:[%s5 + $0x18] sm:$0xff] %v1313
    %1432 = vst [vmem:[%s5 + $0x20] sm:$0xff] %v1318
    %1433 = vst [vmem:[%s5 + $0x28] sm:$0xff] %v1321
    %1434 = vst [vmem:[%s5 + $0x30] sm:$0xff] %v1326
    %1435 = vst [vmem:[%s5 + $0x38] sm:$0xff] %v1329
    %1436 = vst [vmem:[%s5 + $0x40] sm:$0xff] %v1334
    %1437 = vst [vmem:[%s5 + $0x48] sm:$0xff] %v1337
    %1438 = vst [vmem:[%s5 + $0x50] sm:$0xff] %v1342
    %1439 = vst [vmem:[%s5 + $0x58] sm:$0xff] %v1345
    %1440 = vst [vmem:[%s5 + $0x60] sm:$0xff] %v1350
    %1441 = vst [vmem:[%s5 + $0x68] sm:$0xff] %v1353
    %1442 = vst [vmem:[%s5 + $0x70] sm:$0xff] %v1358
    %1443 = vst [vmem:[%s5 + $0x78] sm:$0xff] %v1361
    %1444 = vst [vmem:[%s5 + $0x80] sm:$0xff] %v1366
    %1445 = vst [vmem:[%s5 + $0x88] sm:$0xff] %v1369
    %1446 = vst [vmem:[%s5 + $0x90] sm:$0xff] %v1374
    %1447 = vst [vmem:[%s5 + $0x98] sm:$0xff] %v1377
    %1448 = vst [vmem:[%s5 + $0xa0] sm:$0xff] %v1382
    %1449 = vst [vmem:[%s5 + $0xa8] sm:$0xff] %v1385
    %1450 = vst [vmem:[%s5 + $0xb0] sm:$0xff] %v1390
    %1451 = vst [vmem:[%s5 + $0xb8] sm:$0xff] %v1393
    %1452 = vst [vmem:[%s5 + $0xc0] sm:$0xff] %v1398
    %1453 = vst [vmem:[%s5 + $0xc8] sm:$0xff] %v1401
    %1454 = vst [vmem:[%s5 + $0xd0] sm:$0xff] %v1406
    %1455 = vst [vmem:[%s5 + $0xd8] sm:$0xff] %v1409
    %1456 = vst [vmem:[%s5 + $0xe0] sm:$0xff] %v1414
    %1457 = vst [vmem:[%s5 + $0xe8] sm:$0xff] %v1417
    %1458 = vst [vmem:[%s5 + $0xf0] sm:$0xff] %v1422
    %1459 = vst [vmem:[%s5 + $0xf8] sm:$0xff] %v1425
    // Predicated region
    $region34: #{embedding_classifier_forward.1} parent=1 // pred_check
      _
    $region35: #{embedding_classifier_forward.1} parent=1 // pred_check_branch
      %1461 = sbr.rel (0) target = $region37
    $region36: #{embedding_classifier_forward.1} parent=1 // pred_region
      _
    $region37: #{embedding_classifier_forward.1} parent=1 // pred_fallthru
      _
    // Predicated region
    $region38: #{embedding_classifier_forward.1} parent=1 // pred_check
      _
    $region39: #{embedding_classifier_forward.1} parent=1 // pred_check_branch
      %1463 = sbr.rel (0) target = $region41
    $region40: #{embedding_classifier_forward.1} parent=1 // pred_region
      _
    $region41: #{embedding_classifier_forward.1} parent=1 // pred_fallthru
      _
    %1464 = vsyncpa [#allocation3], 1
    %1465 = vsyncpa [#allocation5], 1

</llo_original>
